<compile_context>
chip_gen: v5e
topology: v5e:2x2
jax: 0.10.0
libtpu: 0.0.40
codegen_flags: <defaults>
</compile_context>

<pallas_src>
import math

import jax
import jax.numpy as jnp
from jax.experimental import pallas as pl
from jax.experimental.pallas import tpu as pltpu


# ----------------------------------------------------------------------------
# Host-side helpers (match torch/kornia semantics exactly)
# ----------------------------------------------------------------------------
def _gaussian_1d(kernel_size: int, sigma: float):
    """Matches torch `gaussian` / `get_gaussian_kernel1d`."""
    x = [i - kernel_size // 2 for i in range(kernel_size)]
    if kernel_size % 2 == 0:
        x = [v + 0.5 for v in x]
    g = [math.exp(-(v * v) / (2.0 * sigma * sigma)) for v in x]
    s = sum(g)
    return [v / s for v in g]


def _compute_padding_1d(k: int):
    """pad_front, pad_rear as in kornia's _compute_padding (one axis)."""
    c = k - 1
    pad_front = c // 2
    pad_rear = c - pad_front
    return pad_front, pad_rear


# ----------------------------------------------------------------------------
# Pallas kernel
# ----------------------------------------------------------------------------
def _make_unsharp_kernel(kx, ky, H, W):
    """kx: horizontal taps (len Kx), ky: vertical taps (len Ky)."""
    Kx, Ky = len(kx), len(ky)
    pw_f, pw_r = _compute_padding_1d(Kx)
    ph_f, ph_r = _compute_padding_1d(Ky)

    def kernel(x_ref, o_ref):
        x = x_ref[...].astype(jnp.float32)            # (TP, H, W)

        # ---- horizontal pass: reflect halo rebuilt from static column slices
        #      (no padded array in HBM; halo columns are x[pw_f..1], x[W-2..]).
        cols = [x[:, :, pw_f - j:pw_f - j + 1] for j in range(pw_f)]
        cols.append(x)
        cols += [x[:, :, W - 2 - j:W - 1 - j] for j in range(pw_r)]
        xpad = cols[0] if len(cols) == 1 else jnp.concatenate(cols, axis=2)

        tmp = jnp.float32(kx[0]) * xpad[:, :, 0:W]
        for j in range(1, Kx):
            tmp = tmp + jnp.float32(kx[j]) * xpad[:, :, j:j + W]

        # ---- vertical pass: reflect halo rebuilt from static row slices.
        rows = [tmp[:, ph_f - i:ph_f - i + 1, :] for i in range(ph_f)]
        rows.append(tmp)
        rows += [tmp[:, H - 2 - i:H - 1 - i, :] for i in range(ph_r)]
        tpad = rows[0] if len(rows) == 1 else jnp.concatenate(rows, axis=1)

        blur = jnp.float32(ky[0]) * tpad[:, 0:H, :]
        for i in range(1, Ky):
            blur = blur + jnp.float32(ky[i]) * tpad[:, i:i + H, :]

        # unsharp: x + (x - blur)
        o_ref[...] = (2.0 * x - blur).astype(o_ref.dtype)

    return kernel


# ----------------------------------------------------------------------------
# Block sizing (VMEM-aware, conservative for v7x's 64 MiB physical VMEM)
# ----------------------------------------------------------------------------
_VMEM_BUDGET_BYTES = 40 * 1024 * 1024    # target working set per grid step
_VMEM_LIMIT_BYTES = 48 * 1024 * 1024     # > v5e/v6e scoped defaults, < v7x phys


def _largest_divisor_leq(n: int, cap: int) -> int:
    cap = max(1, min(cap, n))
    for d in range(cap, 0, -1):
        if n % d == 0:
            return d
    return 1


def _choose_planes_per_block(P, H, W, Ky, Kx, in_bytes, out_bytes):
    Hp, Wp = H + Ky - 1, W + Kx - 1
    per_plane = (
        2 * H * W * in_bytes                      # double-buffered input block
        + 2 * H * W * out_bytes                   # double-buffered output block
        + 4 * (H * Wp + Hp * W + 3 * H * W)       # f32 in-kernel temporaries
    )
    cap = max(1, _VMEM_BUDGET_BYTES // per_plane)
    if P >= 2:
        # keep at least 2 grid steps so both v7x TensorCores get work
        cap = min(cap, pl.cdiv(P, 2))
    # pick a divisor of P so no plane padding / extra HBM copy is needed
    return _largest_divisor_leq(P, cap)


# ----------------------------------------------------------------------------
# Wrapper
# ----------------------------------------------------------------------------
def unsharp_mask_pallas(x, kernel_size, sigma, border_type: str = "reflect"):
    """x: (B, C, H, W). kernel_size=(ky, kx), sigma=(sy, sx)."""
    assert border_type == "reflect", "only reflect border implemented"
    B, C, H, W = x.shape
    ksy, ksx = kernel_size
    sy, sx = sigma

    kx = _gaussian_1d(ksx, sx)   # horizontal taps
    ky = _gaussian_1d(ksy, sy)   # vertical taps

    pw_f, pw_r = _compute_padding_1d(ksx)
    ph_f, ph_r = _compute_padding_1d(ksy)
    assert pw_f <= W - 1 and pw_r <= W - 1 and ph_f <= H - 1 and ph_r <= H - 1, (
        "reflect padding requires pad < spatial dim")

    P = B * C
    planes = x.reshape(P, H, W)        # free reshape; HBM I/O in input dtype

    itemsize = planes.dtype.itemsize
    tp = _choose_planes_per_block(P, H, W, ksy, ksx, itemsize, itemsize)
    grid = (P // tp,)

    kernel = _make_unsharp_kernel(kx, ky, H, W)

    # TODO(synk): for planes so large that even a single (1, H, W) block blows
    # the VMEM budget, tile H into strips with a (Ky-1)-row halo.
    out = pl.pallas_call(
        kernel,
        out_shape=jax.ShapeDtypeStruct((P, H, W), x.dtype),
        grid_spec=pltpu.PrefetchScalarGridSpec(
            num_scalar_prefetch=0,
            grid=grid,
            in_specs=[pl.BlockSpec((tp, H, W), lambda p: (p, 0, 0))],
            out_specs=pl.BlockSpec((tp, H, W), lambda p: (p, 0, 0)),
        ),
        compiler_params=pltpu.CompilerParams(
            dimension_semantics=("parallel",),
            vmem_limit_bytes=_VMEM_LIMIT_BYTES,
        ),
    )(planes)

    return out.reshape(B, C, H, W)


# ----------------------------------------------------------------------------
# Pure-JAX reference (same math) for a sanity check
# ----------------------------------------------------------------------------
def _reference_unsharp(x, kernel_size, sigma):
    B, C, H, W = x.shape
    ksy, ksx = kernel_size
    sy, sx = sigma
    kx = jnp.asarray(_gaussian_1d(ksx, sx), jnp.float32)
    ky = jnp.asarray(_gaussian_1d(ksy, sy), jnp.float32)
    pw_f, pw_r = _compute_padding_1d(ksx)
    ph_f, ph_r = _compute_padding_1d(ksy)
    planes = x.reshape(B * C, H, W).astype(jnp.float32)
    xp = jnp.pad(planes, ((0, 0), (0, 0), (pw_f, pw_r)), mode="reflect")
    tmp = sum(kx[j] * xp[:, :, j:j + W] for j in range(ksx))
    tp_ = jnp.pad(tmp, ((0, 0), (ph_f, ph_r), (0, 0)), mode="reflect")
    blur = sum(ky[i] * tp_[:, i:i + H, :] for i in range(ksy))
    out = 2.0 * planes - blur
    return out.reshape(B, C, H, W).astype(x.dtype)


if __name__ == "__main__":
    key = jax.random.PRNGKey(0)
    B, C, H, W = 2, 4, 16, 16
    x = jax.random.normal(key, (B, C, H, W), dtype=jnp.float32)

    kernel_size = (5, 5)
    sigma = (1.5, 1.5)

    out = unsharp_mask_pallas(x, kernel_size, sigma)
    out = jax.block_until_ready(out)

    ref = _reference_unsharp(x, kernel_size, sigma)
    assert out.shape == (B, C, H, W)
    assert jnp.max(jnp.abs(out.astype(jnp.float32) - ref.astype(jnp.float32))) < 1e-4

    print("KERNEL_OK")
</pallas_src>

<mosaic_0001>
module attributes {stable_mosaic.version = 11 : i64} {
  func.func @kernel(%arg0: i32, %arg1: memref<4x16x16xf32, #tpu.memory_space<vmem>>, %arg2: memref<4x16x16xf32, #tpu.memory_space<vmem>>) attributes {dimension_semantics = [#tpu.dimension_semantics<parallel>], iteration_bounds = array<i64: 2>, scalar_prefetch = 0 : i64, scratch_operands = 0 : i64, tpu.core_type = #tpu.core_type<tc>, window_params = [{transform_indices = @transform_0, window_bounds = array<i64: 4, 16, 16>}, {transform_indices = @transform_1, window_bounds = array<i64: 4, 16, 16>}]} {
    %c0 = arith.constant 0 : index
    %c0_0 = arith.constant 0 : index
    %c0_1 = arith.constant 0 : index
    %0 = vector.load %arg1[%c0, %c0_0, %c0_1] : memref<4x16x16xf32, #tpu.memory_space<vmem>>, vector<4x16x16xf32>
    %1 = vector.extract_strided_slice %0 {offsets = [0, 0, 2], sizes = [4, 16, 1], strides = [1, 1, 1]} : vector<4x16x16xf32> to vector<4x16x1xf32>
    %2 = vector.extract_strided_slice %0 {offsets = [0, 0, 1], sizes = [4, 16, 1], strides = [1, 1, 1]} : vector<4x16x16xf32> to vector<4x16x1xf32>
    %3 = vector.extract_strided_slice %0 {offsets = [0, 0, 14], sizes = [4, 16, 1], strides = [1, 1, 1]} : vector<4x16x16xf32> to vector<4x16x1xf32>
    %4 = vector.extract_strided_slice %0 {offsets = [0, 0, 13], sizes = [4, 16, 1], strides = [1, 1, 1]} : vector<4x16x16xf32> to vector<4x16x1xf32>
    %5 = tpu.concatenate %1, %2, %0, %3, %4 in 2 : vector<4x16x1xf32>, vector<4x16x1xf32>, vector<4x16x16xf32>, vector<4x16x1xf32>, vector<4x16x1xf32> -> vector<4x16x20xf32>
    %6 = vector.extract_strided_slice %5 {offsets = [0, 0, 0], sizes = [4, 16, 16], strides = [1, 1, 1]} : vector<4x16x20xf32> to vector<4x16x16xf32>
    %cst = arith.constant 0.120078385 : f32
    %7 = vector.broadcast %cst : f32 to vector<4x16x16xf32>
    %8 = arith.mulf %7, %6 : vector<4x16x16xf32>
    %9 = vector.extract_strided_slice %5 {offsets = [0, 0, 1], sizes = [4, 16, 16], strides = [1, 1, 1]} : vector<4x16x20xf32> to vector<4x16x16xf32>
    %cst_2 = arith.constant 0.233880758 : f32
    %10 = vector.broadcast %cst_2 : f32 to vector<4x16x16xf32>
    %11 = arith.mulf %10, %9 : vector<4x16x16xf32>
    %12 = arith.addf %8, %11 : vector<4x16x16xf32>
    %13 = vector.extract_strided_slice %5 {offsets = [0, 0, 2], sizes = [4, 16, 16], strides = [1, 1, 1]} : vector<4x16x20xf32> to vector<4x16x16xf32>
    %cst_3 = arith.constant 0.292081714 : f32
    %14 = vector.broadcast %cst_3 : f32 to vector<4x16x16xf32>
    %15 = arith.mulf %14, %13 : vector<4x16x16xf32>
    %16 = arith.addf %12, %15 : vector<4x16x16xf32>
    %17 = vector.extract_strided_slice %5 {offsets = [0, 0, 3], sizes = [4, 16, 16], strides = [1, 1, 1]} : vector<4x16x20xf32> to vector<4x16x16xf32>
    %cst_4 = arith.constant 0.233880758 : f32
    %18 = vector.broadcast %cst_4 : f32 to vector<4x16x16xf32>
    %19 = arith.mulf %18, %17 : vector<4x16x16xf32>
    %20 = arith.addf %16, %19 : vector<4x16x16xf32>
    %21 = vector.extract_strided_slice %5 {offsets = [0, 0, 4], sizes = [4, 16, 16], strides = [1, 1, 1]} : vector<4x16x20xf32> to vector<4x16x16xf32>
    %cst_5 = arith.constant 0.120078385 : f32
    %22 = vector.broadcast %cst_5 : f32 to vector<4x16x16xf32>
    %23 = arith.mulf %22, %21 : vector<4x16x16xf32>
    %24 = arith.addf %20, %23 : vector<4x16x16xf32>
    %25 = vector.extract_strided_slice %24 {offsets = [0, 2, 0], sizes = [4, 1, 16], strides = [1, 1, 1]} : vector<4x16x16xf32> to vector<4x1x16xf32>
    %26 = vector.extract_strided_slice %24 {offsets = [0, 1, 0], sizes = [4, 1, 16], strides = [1, 1, 1]} : vector<4x16x16xf32> to vector<4x1x16xf32>
    %27 = vector.extract_strided_slice %24 {offsets = [0, 14, 0], sizes = [4, 1, 16], strides = [1, 1, 1]} : vector<4x16x16xf32> to vector<4x1x16xf32>
    %28 = vector.extract_strided_slice %24 {offsets = [0, 13, 0], sizes = [4, 1, 16], strides = [1, 1, 1]} : vector<4x16x16xf32> to vector<4x1x16xf32>
    %29 = tpu.concatenate %25, %26, %24, %27, %28 in 1 : vector<4x1x16xf32>, vector<4x1x16xf32>, vector<4x16x16xf32>, vector<4x1x16xf32>, vector<4x1x16xf32> -> vector<4x20x16xf32>
    %30 = vector.extract_strided_slice %29 {offsets = [0, 0, 0], sizes = [4, 16, 16], strides = [1, 1, 1]} : vector<4x20x16xf32> to vector<4x16x16xf32>
    %cst_6 = arith.constant 0.120078385 : f32
    %31 = vector.broadcast %cst_6 : f32 to vector<4x16x16xf32>
    %32 = arith.mulf %31, %30 : vector<4x16x16xf32>
    %33 = vector.extract_strided_slice %29 {offsets = [0, 1, 0], sizes = [4, 16, 16], strides = [1, 1, 1]} : vector<4x20x16xf32> to vector<4x16x16xf32>
    %cst_7 = arith.constant 0.233880758 : f32
    %34 = vector.broadcast %cst_7 : f32 to vector<4x16x16xf32>
    %35 = arith.mulf %34, %33 : vector<4x16x16xf32>
    %36 = arith.addf %32, %35 : vector<4x16x16xf32>
    %37 = vector.extract_strided_slice %29 {offsets = [0, 2, 0], sizes = [4, 16, 16], strides = [1, 1, 1]} : vector<4x20x16xf32> to vector<4x16x16xf32>
    %cst_8 = arith.constant 0.292081714 : f32
    %38 = vector.broadcast %cst_8 : f32 to vector<4x16x16xf32>
    %39 = arith.mulf %38, %37 : vector<4x16x16xf32>
    %40 = arith.addf %36, %39 : vector<4x16x16xf32>
    %41 = vector.extract_strided_slice %29 {offsets = [0, 3, 0], sizes = [4, 16, 16], strides = [1, 1, 1]} : vector<4x20x16xf32> to vector<4x16x16xf32>
    %cst_9 = arith.constant 0.233880758 : f32
    %42 = vector.broadcast %cst_9 : f32 to vector<4x16x16xf32>
    %43 = arith.mulf %42, %41 : vector<4x16x16xf32>
    %44 = arith.addf %40, %43 : vector<4x16x16xf32>
    %45 = vector.extract_strided_slice %29 {offsets = [0, 4, 0], sizes = [4, 16, 16], strides = [1, 1, 1]} : vector<4x20x16xf32> to vector<4x16x16xf32>
    %cst_10 = arith.constant 0.120078385 : f32
    %46 = vector.broadcast %cst_10 : f32 to vector<4x16x16xf32>
    %47 = arith.mulf %46, %45 : vector<4x16x16xf32>
    %48 = arith.addf %44, %47 : vector<4x16x16xf32>
    %cst_11 = arith.constant 2.000000e+00 : f32
    %49 = vector.broadcast %cst_11 : f32 to vector<4x16x16xf32>
    %50 = arith.mulf %49, %0 : vector<4x16x16xf32>
    %51 = arith.subf %50, %48 : vector<4x16x16xf32>
    %c0_12 = arith.constant 0 : index
    %c0_13 = arith.constant 0 : index
    %c0_14 = arith.constant 0 : index
    %52 = vector.load %arg2[%c0_12, %c0_13, %c0_14] : memref<4x16x16xf32, #tpu.memory_space<vmem>>, vector<4x16x16xf32>
    tpu.vector_store %arg2[%c0_12, %c0_13, %c0_14], %51 {strides = array<i32>} : memref<4x16x16xf32, #tpu.memory_space<vmem>>, vector<4x16x16xf32>,
    return
  }
  func.func @transform_0(%arg0: i32) -> (i32, i32, i32) {
    %c0_i32 = arith.constant 0 : i32
    %c0_i32_0 = arith.constant 0 : i32
    %c0_i32_1 = arith.constant 0 : i32
    return %arg0, %c0_i32, %c0_i32_0 : i32, i32, i32
  }
  func.func @transform_1(%arg0: i32) -> (i32, i32, i32) {
    %c0_i32 = arith.constant 0 : i32
    %c0_i32_0 = arith.constant 0 : i32
    %c0_i32_1 = arith.constant 0 : i32
    return %arg0, %c0_i32, %c0_i32_0 : i32, i32, i32
  }
}

</mosaic_0001>

<llo_original>
// kernel: tpu_custom_call.1
$region0: #{tpu_custom_call.1}
  #allocation0 [shape = 'u32[]', space=smem, size = 0x4, offset = 0x4, fixed_abs, tag = 'smem constant byte address 0x4 - core index']
  #allocation1 [shape = 'u32[72,128]{1,0:T(1,128)}', space=vmem, size = 0x9000, scoped, tag = 'internal scratch']
  %s0 = inlined_call_operand.hbm [shape: f32[8,16,16], index: 0, kind: input, shape index: {}]
  %s1 = inlined_call_operand.hbm [shape: f32[8,16,16], index: 1, kind: output, shape index: {}]
  %s2 = sld [smem:[#allocation0]]
  $region41: #{tpu_custom_call.1} parent=0
    _
  %s4 = ssub.s32 1, %s2
  %s5 = scalar_select 0, %s4, %s2
  $region1: #{tpu_custom_call.1} parent=0
    #allocation2 [shape = 'u8[65536]{0}', space=vmem, size = 0x10000, scoped, tag = 'input window, operand 0']
    #allocation3 [shape = 's32[2]{0}', space=sflag, size = 0x8, scoped, tag = 'scoped memory for tpu_custom_call.1']
    #allocation4 [shape = 's32[2]{0}', space=sflag, size = 0x8, scoped, tag = 'scoped memory for tpu_custom_call.1']
    #allocation5 [shape = 'u8[65536]{0}', space=vmem, size = 0x10000, scoped, tag = 'output window, operand 0']
    %6 = vsyncpa [#allocation3], 0
    %s7 = scalar_lea.sflag [#allocation3], 1
    %8 = vsyncpa %s7, 0
    %9 = vsyncpa [#allocation4], 0
    %s10 = scalar_lea.sflag [#allocation4], 1
    %11 = vsyncpa %s10, 0
    loop: start=0, step=1, limit=4
    $region2: #{tpu_custom_call.1} parent=1 // loop_pre_header
      _
    $region3: #{tpu_custom_call.1} parent=1 // loop_header
      %s13 = sphi 0, %s17
      %p14 = scmp.ge.s32.totalorder %s13, 4
      %s23 = sphi 0, %s25
      %s26 = sphi 0, %s23
      %s27 = sphi 0, %s26
      %s43 = sphi 0, %s27
      %s49 = sphi 0, %s51
      %s52 = sphi 0, %s49
      %s53 = sphi 0, %s52
      %s69 = sphi 0, %s53
    $region4: #{tpu_custom_call.1} parent=1 // loop_header_branch
      %16 = sbr.rel (%p14) target = $region8
    $region5: #{tpu_custom_call.1} parent=1 // loop_body
      %s18 = ssub.s32 %s13, 1
      %s19 = ssub.s32 %s13, 2
      %s20 = sadd.s32 %s13, 1
      %s21 = ssub.s32 %s13, %s20
      %p22 = scmp.eq.s32.totalorder %s21, 0
      %s24 = sadd.s32 %s23, 1
      %s25 = scalar_select %p22, %s23, %s24
      %p28 = pneg %p22
      %p29 = scmp.eq.s32.totalorder %s13, 1
      %p30 = por %p28, %p29
      %p31 = scmp.ne.s32.totalorder %s23, %s26
      %p32 = scmp.eq.s32.totalorder %s13, 0
      %p33 = por %p31, %p32
      %p34 = scmp.ne.s32.totalorder %s23, %s26
      %p35 = scmp.eq.s32.totalorder %s18, 1
      %p36 = por %p34, %p35
      %p37 = scmp.ne.s32.totalorder %s26, %s27
      %p38 = scmp.eq.s32.totalorder %s18, 0
      %p39 = por %p37, %p38
      %p40 = scmp.ne.s32.totalorder %s26, %s27
      %p41 = scmp.eq.s32.totalorder %s19, 1
      %p42 = por %p40, %p41
      %p44 = scmp.ne.s32.totalorder %s27, %s43
      %p45 = scmp.eq.s32.totalorder %s19, 0
      %p46 = por %p44, %p45
      %s47 = ssub.s32 %s13, %s20
      %p48 = scmp.eq.s32.totalorder %s47, 0
      %s50 = sadd.s32 %s49, 1
      %s51 = scalar_select %p48, %s49, %s50
      %p54 = pneg %p48
      %p55 = scmp.eq.s32.totalorder %s13, 1
      %p56 = por %p54, %p55
      %p57 = scmp.ne.s32.totalorder %s49, %s52
      %p58 = scmp.eq.s32.totalorder %s13, 0
      %p59 = por %p57, %p58
      %p60 = scmp.ne.s32.totalorder %s49, %s52
      %p61 = scmp.eq.s32.totalorder %s18, 1
      %p62 = por %p60, %p61
      %p63 = scmp.ne.s32.totalorder %s52, %s53
      %p64 = scmp.eq.s32.totalorder %s18, 0
      %p65 = por %p63, %p64
      %p66 = scmp.ne.s32.totalorder %s52, %s53
      %p67 = scmp.eq.s32.totalorder %s19, 1
      %p68 = por %p66, %p67
      %p70 = scmp.ne.s32.totalorder %s53, %s69
      %p71 = scmp.eq.s32.totalorder %s19, 0
      %p72 = por %p70, %p71
      %p73 = scmp.le.s32.totalorder 1, %s13
      %p74 = scmp.lt.s32.totalorder %s13, 3
      %p75 = pnand %p73, %p74
      %p76 = pneg %p75
      // Predicated region
      $region9: #{tpu_custom_call.1} parent=5 // pred_check
        _
      $region10: #{tpu_custom_call.1} parent=5 // pred_check_branch
        %78 = sbr.rel (%p75) target = $region12
      $region11: #{tpu_custom_call.1} parent=5 // pred_region
        %s79 = ssub.s32 %s13, 1
      $region12: #{tpu_custom_call.1} parent=5 // pred_fallthru
        _
      %p80 = scmp.lt.s32.totalorder %s13, 2
      // Predicated region
      $region13: #{tpu_custom_call.1} parent=5 // pred_check
        %p81 = pneg %p80
      $region14: #{tpu_custom_call.1} parent=5 // pred_check_branch
        %83 = sbr.rel (%p81) target = $region16
      $region15: #{tpu_custom_call.1} parent=5 // pred_region
        // Predicated region
        $region17: #{tpu_custom_call.1} parent=15 // pred_check
          %p84 = pneg %p33
        $region18: #{tpu_custom_call.1} parent=15 // pred_check_branch
          %86 = sbr.rel (%p84) target = $region20
        $region19: #{tpu_custom_call.1} parent=15 // pred_region
          %s87 = sand.u32 %s23, 1
          %s88 = scalar_lea.sflag [#allocation3], %s87
          %s89 = sand.u32 %s23, 1
          %s90 = smul.addr %s89, 64
          %s91 = scalar_lea.vmem [#allocation2], %s90
          %s92 = smul.u32 4, %s13
          %94 = vsyncadd %s88, 0
          %s95 = smul.addr %s92, 2
          %s96 = smul.addr %s95, 8
          %s97 = scalar_lea.hbm %s0, %s96
          %s98 = sshll.u32 %s97, 4
          %s99 = int_to_ptr.hbm [resolvable:$true] %s98
          %s100 = sshll.u32 %s91, 4
          %s101 = int_to_ptr.vmem [resolvable:$true] %s100
          %106 = dma.hbm_to_vmem [thread:$0]  %s99, 1024, %s101, %s88, 128, 128, 8
        $region20: #{tpu_custom_call.1} parent=15 // pred_fallthru
          _
      $region16: #{tpu_custom_call.1} parent=5 // pred_fallthru
        _
      %p107 = scmp.le.s32.totalorder 1, %s13
      %p108 = scmp.lt.s32.totalorder %s13, 3
      %p109 = pnand %p107, %p108
      %p110 = pneg %p109
      // Predicated region
      $region21: #{tpu_custom_call.1} parent=5 // pred_check
        _
      $region22: #{tpu_custom_call.1} parent=5 // pred_check_branch
        %112 = sbr.rel (%p109) target = $region24
      $region23: #{tpu_custom_call.1} parent=5 // pred_region
        %s113 = ssub.s32 %s13, 1
        %s114 = sand.u32 %s26, 1
        %s115 = scalar_lea.sflag [#allocation3], %s114
        %s116 = sand.u32 %s26, 1
        %s117 = smul.addr %s116, 64
        %s118 = scalar_lea.vmem [#allocation2], %s117
        // Predicated region
        $region25: #{tpu_custom_call.1} parent=23 // pred_check
          %p119 = pneg %p39
        $region26: #{tpu_custom_call.1} parent=23 // pred_check_branch
          %121 = sbr.rel (%p119) target = $region28
        $region27: #{tpu_custom_call.1} parent=23 // pred_region
          %123 = dma.done %s115, 1024
        $region28: #{tpu_custom_call.1} parent=23 // pred_fallthru
          _
        %s124 = sand.u32 %s26, 1
        %s125 = scalar_lea.sflag [#allocation3], %s124
        %s126 = sand.u32 %s26, 1
        %s127 = smul.addr %s126, 64
        %s128 = scalar_lea.vmem [#allocation2], %s127
        %p129 = pneg %p39
        %p130 = pneg %p36
        %p131 = pneg %p65
        %p132 = pneg %p62
        %s133 = sand.u32 %s52, 1
        %s134 = scalar_lea.sflag [#allocation4], %s133
        %s135 = sand.u32 %s52, 1
        %s136 = smul.addr %s135, 64
        %s137 = scalar_lea.vmem [#allocation5], %s136
        %s138 = smul.u32 4, %s18
        %s139 = smul.u32 4, %s18
        %v140 = vld [vmem:[%s118] sm:$0xff]
        %v141 = vld [vmem:[%s118 + $0x8] sm:$0xff]
        %v142 = vld [vmem:[%s118 + $0x10] sm:$0xff]
        %v143 = vld [vmem:[%s118 + $0x18] sm:$0xff]
        %v144 = vld [vmem:[%s118 + $0x20] sm:$0xff]
        %v145 = vld [vmem:[%s118 + $0x28] sm:$0xff]
        %v146 = vld [vmem:[%s118 + $0x30] sm:$0xff]
        %v147 = vld [vmem:[%s118 + $0x38] sm:$0xff]
        %156 = vrot.lane.b32.xlu0 %v140, 126
        %v157 = vpop.permute.xlu0 %156
        %158 = vrot.lane.b32.xlu0 %v141, 126
        %v159 = vpop.permute.xlu0 %158
        %160 = vrot.lane.b32.xlu0 %v142, 126
        %v161 = vpop.permute.xlu0 %160
        %162 = vrot.lane.b32.xlu0 %v143, 126
        %v163 = vpop.permute.xlu0 %162
        %164 = vrot.lane.b32.xlu0 %v144, 126
        %v165 = vpop.permute.xlu0 %164
        %166 = vrot.lane.b32.xlu0 %v145, 126
        %v167 = vpop.permute.xlu0 %166
        %168 = vrot.lane.b32.xlu0 %v146, 126
        %v169 = vpop.permute.xlu0 %168
        %170 = vrot.lane.b32.xlu0 %v147, 126
        %v171 = vpop.permute.xlu0 %170
        %180 = vrot.lane.b32.xlu0 %v140, 2
        %v181 = vpop.permute.xlu0 %180
        %182 = vrot.lane.b32.xlu0 %v141, 2
        %v183 = vpop.permute.xlu0 %182
        %184 = vrot.lane.b32.xlu0 %v142, 2
        %v185 = vpop.permute.xlu0 %184
        %186 = vrot.lane.b32.xlu0 %v143, 2
        %v187 = vpop.permute.xlu0 %186
        %188 = vrot.lane.b32.xlu0 %v144, 2
        %v189 = vpop.permute.xlu0 %188
        %190 = vrot.lane.b32.xlu0 %v145, 2
        %v191 = vpop.permute.xlu0 %190
        %192 = vrot.lane.b32.xlu0 %v146, 2
        %v193 = vpop.permute.xlu0 %192
        %194 = vrot.lane.b32.xlu0 %v147, 2
        %v195 = vpop.permute.xlu0 %194
        %204 = vrot.lane.b32.xlu0 %v140, 4
        %v205 = vpop.permute.xlu0 %204
        %206 = vrot.lane.b32.xlu0 %v141, 4
        %v207 = vpop.permute.xlu0 %206
        %208 = vrot.lane.b32.xlu0 %v142, 4
        %v209 = vpop.permute.xlu0 %208
        %210 = vrot.lane.b32.xlu0 %v143, 4
        %v211 = vpop.permute.xlu0 %210
        %212 = vrot.lane.b32.xlu0 %v144, 4
        %v213 = vpop.permute.xlu0 %212
        %214 = vrot.lane.b32.xlu0 %v145, 4
        %v215 = vpop.permute.xlu0 %214
        %216 = vrot.lane.b32.xlu0 %v146, 4
        %v217 = vpop.permute.xlu0 %216
        %218 = vrot.lane.b32.xlu0 %v147, 4
        %v219 = vpop.permute.xlu0 %218
        %228 = vrot.lane.b32.xlu0 %v140, 6
        %v229 = vpop.permute.xlu0 %228
        %230 = vrot.lane.b32.xlu0 %v141, 6
        %v231 = vpop.permute.xlu0 %230
        %232 = vrot.lane.b32.xlu0 %v142, 6
        %v233 = vpop.permute.xlu0 %232
        %234 = vrot.lane.b32.xlu0 %v143, 6
        %v235 = vpop.permute.xlu0 %234
        %236 = vrot.lane.b32.xlu0 %v144, 6
        %v237 = vpop.permute.xlu0 %236
        %238 = vrot.lane.b32.xlu0 %v145, 6
        %v239 = vpop.permute.xlu0 %238
        %240 = vrot.lane.b32.xlu0 %v146, 6
        %v241 = vpop.permute.xlu0 %240
        %242 = vrot.lane.b32.xlu0 %v147, 6
        %v243 = vpop.permute.xlu0 %242
        %vm252 = vcmask 7168
        %v253 = vsel %vm252, %v157, %v140
        %v254 = vsel %vm252, %v159, %v141
        %v255 = vsel %vm252, %v161, %v142
        %v256 = vsel %vm252, %v163, %v143
        %v257 = vsel %vm252, %v165, %v144
        %v258 = vsel %vm252, %v167, %v145
        %v259 = vsel %vm252, %v169, %v146
        %v260 = vsel %vm252, %v171, %v147
        %vm261 = vcmask 15360
        %v262 = vsel %vm261, %v253, %v181
        %v263 = vsel %vm261, %v254, %v183
        %v264 = vsel %vm261, %v255, %v185
        %v265 = vsel %vm261, %v256, %v187
        %v266 = vsel %vm261, %v257, %v189
        %v267 = vsel %vm261, %v258, %v191
        %v268 = vsel %vm261, %v259, %v193
        %v269 = vsel %vm261, %v260, %v195
        %vm270 = vcmask 146432
        %v271 = vsel %vm270, %v262, %v205
        %v272 = vsel %vm270, %v263, %v207
        %v273 = vsel %vm270, %v264, %v209
        %v274 = vsel %vm270, %v265, %v211
        %v275 = vsel %vm270, %v266, %v213
        %v276 = vsel %vm270, %v267, %v215
        %v277 = vsel %vm270, %v268, %v217
        %v278 = vsel %vm270, %v269, %v219
        %vm279 = vcmask 154624
        %v280 = vsel %vm279, %v271, %v229
        %v281 = vsel %vm279, %v272, %v231
        %v282 = vsel %vm279, %v273, %v233
        %v283 = vsel %vm279, %v274, %v235
        %v284 = vsel %vm279, %v275, %v237
        %v285 = vsel %vm279, %v276, %v239
        %v286 = vsel %vm279, %v277, %v241
        %v287 = vsel %vm279, %v278, %v243
        %v288 = vmul.f32 %v280, 0.120078385
        %v289 = vmul.f32 %v281, 0.120078385
        %v290 = vmul.f32 %v282, 0.120078385
        %v291 = vmul.f32 %v283, 0.120078385
        %v292 = vmul.f32 %v284, 0.120078385
        %v293 = vmul.f32 %v285, 0.120078385
        %v294 = vmul.f32 %v286, 0.120078385
        %v295 = vmul.f32 %v287, 0.120078385
        %v296 = vmul.f32 %v280, 0.23388076
        %v297 = vmul.f32 %v281, 0.23388076
        %v298 = vmul.f32 %v282, 0.23388076
        %v299 = vmul.f32 %v283, 0.23388076
        %v300 = vmul.f32 %v284, 0.23388076
        %v301 = vmul.f32 %v285, 0.23388076
        %v302 = vmul.f32 %v286, 0.23388076
        %v303 = vmul.f32 %v287, 0.23388076
        %312 = vrot.lane.b32.xlu0 %v296, 127
        %v313 = vpop.permute.xlu0 %312
        %314 = vrot.lane.b32.xlu0 %v297, 127
        %v315 = vpop.permute.xlu0 %314
        %316 = vrot.lane.b32.xlu0 %v298, 127
        %v317 = vpop.permute.xlu0 %316
        %318 = vrot.lane.b32.xlu0 %v299, 127
        %v319 = vpop.permute.xlu0 %318
        %320 = vrot.lane.b32.xlu0 %v300, 127
        %v321 = vpop.permute.xlu0 %320
        %322 = vrot.lane.b32.xlu0 %v301, 127
        %v323 = vpop.permute.xlu0 %322
        %324 = vrot.lane.b32.xlu0 %v302, 127
        %v325 = vpop.permute.xlu0 %324
        %326 = vrot.lane.b32.xlu0 %v303, 127
        %v327 = vpop.permute.xlu0 %326
        %v336 = vadd.f32 %v288, %v313
        %v337 = vadd.f32 %v289, %v315
        %v338 = vadd.f32 %v290, %v317
        %v339 = vadd.f32 %v291, %v319
        %v340 = vadd.f32 %v292, %v321
        %v341 = vadd.f32 %v293, %v323
        %v342 = vadd.f32 %v294, %v325
        %v343 = vadd.f32 %v295, %v327
        %v344 = vmul.f32 %v280, 0.2920817
        %v345 = vmul.f32 %v281, 0.2920817
        %v346 = vmul.f32 %v282, 0.2920817
        %v347 = vmul.f32 %v283, 0.2920817
        %v348 = vmul.f32 %v284, 0.2920817
        %v349 = vmul.f32 %v285, 0.2920817
        %v350 = vmul.f32 %v286, 0.2920817
        %v351 = vmul.f32 %v287, 0.2920817
        %360 = vrot.lane.b32.xlu0 %v344, 126
        %v361 = vpop.permute.xlu0 %360
        %362 = vrot.lane.b32.xlu0 %v345, 126
        %v363 = vpop.permute.xlu0 %362
        %364 = vrot.lane.b32.xlu0 %v346, 126
        %v365 = vpop.permute.xlu0 %364
        %366 = vrot.lane.b32.xlu0 %v347, 126
        %v367 = vpop.permute.xlu0 %366
        %368 = vrot.lane.b32.xlu0 %v348, 126
        %v369 = vpop.permute.xlu0 %368
        %370 = vrot.lane.b32.xlu0 %v349, 126
        %v371 = vpop.permute.xlu0 %370
        %372 = vrot.lane.b32.xlu0 %v350, 126
        %v373 = vpop.permute.xlu0 %372
        %374 = vrot.lane.b32.xlu0 %v351, 126
        %v375 = vpop.permute.xlu0 %374
        %v384 = vadd.f32 %v336, %v361
        %v385 = vadd.f32 %v337, %v363
        %v386 = vadd.f32 %v338, %v365
        %v387 = vadd.f32 %v339, %v367
        %v388 = vadd.f32 %v340, %v369
        %v389 = vadd.f32 %v341, %v371
        %v390 = vadd.f32 %v342, %v373
        %v391 = vadd.f32 %v343, %v375
        %392 = vrot.lane.b32.xlu0 %v296, 125
        %v393 = vpop.permute.xlu0 %392
        %394 = vrot.lane.b32.xlu0 %v297, 125
        %v395 = vpop.permute.xlu0 %394
        %396 = vrot.lane.b32.xlu0 %v298, 125
        %v397 = vpop.permute.xlu0 %396
        %398 = vrot.lane.b32.xlu0 %v299, 125
        %v399 = vpop.permute.xlu0 %398
        %400 = vrot.lane.b32.xlu0 %v300, 125
        %v401 = vpop.permute.xlu0 %400
        %402 = vrot.lane.b32.xlu0 %v301, 125
        %v403 = vpop.permute.xlu0 %402
        %404 = vrot.lane.b32.xlu0 %v302, 125
        %v405 = vpop.permute.xlu0 %404
        %406 = vrot.lane.b32.xlu0 %v303, 125
        %v407 = vpop.permute.xlu0 %406
        %v416 = vadd.f32 %v384, %v393
        %v417 = vadd.f32 %v385, %v395
        %v418 = vadd.f32 %v386, %v397
        %v419 = vadd.f32 %v387, %v399
        %v420 = vadd.f32 %v388, %v401
        %v421 = vadd.f32 %v389, %v403
        %v422 = vadd.f32 %v390, %v405
        %v423 = vadd.f32 %v391, %v407
        %432 = vrot.lane.b32.xlu0 %v288, 124
        %v433 = vpop.permute.xlu0 %432
        %434 = vrot.lane.b32.xlu0 %v289, 124
        %v435 = vpop.permute.xlu0 %434
        %436 = vrot.lane.b32.xlu0 %v290, 124
        %v437 = vpop.permute.xlu0 %436
        %438 = vrot.lane.b32.xlu0 %v291, 124
        %v439 = vpop.permute.xlu0 %438
        %440 = vrot.lane.b32.xlu0 %v292, 124
        %v441 = vpop.permute.xlu0 %440
        %442 = vrot.lane.b32.xlu0 %v293, 124
        %v443 = vpop.permute.xlu0 %442
        %444 = vrot.lane.b32.xlu0 %v294, 124
        %v445 = vpop.permute.xlu0 %444
        %446 = vrot.lane.b32.xlu0 %v295, 124
        %v447 = vpop.permute.xlu0 %446
        %v456 = vadd.f32 %v416, %v433
        %v457 = vadd.f32 %v417, %v435
        %v458 = vadd.f32 %v418, %v437
        %v459 = vadd.f32 %v419, %v439
        %v460 = vadd.f32 %v420, %v441
        %v461 = vadd.f32 %v421, %v443
        %v462 = vadd.f32 %v422, %v445
        %v463 = vadd.f32 %v423, %v447
        %v468 = vrot.slane %v456, 2
        %v469 = vrot.slane %v458, 2
        %v470 = vrot.slane %v460, 2
        %v471 = vrot.slane %v462, 2
        %vm480 = vcmask 1041408
        %v481 = vrot.slane %v456, 6
        %v482 = vrot.slane %v457, 6
        %v483 = vsel %vm480, %v481, %v482
        %v484 = vrot.slane %v458, 6
        %v485 = vrot.slane %v459, 6
        %v486 = vsel %vm480, %v484, %v485
        %v487 = vrot.slane %v460, 6
        %v488 = vrot.slane %v461, 6
        %v489 = vsel %vm480, %v487, %v488
        %v490 = vrot.slane %v462, 6
        %v491 = vrot.slane %v463, 6
        %v492 = vsel %vm480, %v490, %v491
        %v505 = vrot.slane %v457, 4
        %v506 = vrot.slane %v459, 4
        %v507 = vrot.slane %v461, 4
        %v508 = vrot.slane %v463, 4
        %v513 = vrot.slane %v457, 2
        %v514 = vrot.slane %v459, 2
        %v515 = vrot.slane %v461, 2
        %v516 = vrot.slane %v463, 2
        %vm521 = vcmask 1040384
        %v522 = vsel %vm521, %v468, %v456
        %v523 = vsel %vm521, %v469, %v458
        %v524 = vsel %vm521, %v470, %v460
        %v525 = vsel %vm521, %v471, %v462
        %v526 = vsel %vm480, %v522, %v481
        %v527 = vsel %vm480, %v523, %v484
        %v528 = vsel %vm480, %v524, %v487
        %v529 = vsel %vm480, %v525, %v490
        %v530 = vsel %vm480, %v482, %v505
        %v531 = vsel %vm480, %v485, %v506
        %v532 = vsel %vm480, %v488, %v507
        %v533 = vsel %vm480, %v491, %v508
        %vm534 = vcmask 1042432
        %v535 = vsel %vm534, %v530, %v513
        %v536 = vsel %vm534, %v531, %v514
        %v537 = vsel %vm534, %v532, %v515
        %v538 = vsel %vm534, %v533, %v516
        %v539 = vmul.f32 %v526, 0.120078385
        %v540 = vmul.f32 %v483, 0.120078385
        %v541 = vmul.f32 %v527, 0.120078385
        %v542 = vmul.f32 %v486, 0.120078385
        %v543 = vmul.f32 %v528, 0.120078385
        %v544 = vmul.f32 %v489, 0.120078385
        %v545 = vmul.f32 %v529, 0.120078385
        %v546 = vmul.f32 %v492, 0.120078385
        %v547 = vmul.f32 %v526, 0.23388076
        %v548 = vmul.f32 %v483, 0.23388076
        %v549 = vmul.f32 %v535, 0.23388076
        %v550 = vmul.f32 %v527, 0.23388076
        %v551 = vmul.f32 %v486, 0.23388076
        %v552 = vmul.f32 %v536, 0.23388076
        %v553 = vmul.f32 %v528, 0.23388076
        %v554 = vmul.f32 %v489, 0.23388076
        %v555 = vmul.f32 %v537, 0.23388076
        %v556 = vmul.f32 %v529, 0.23388076
        %v557 = vmul.f32 %v492, 0.23388076
        %v558 = vmul.f32 %v538, 0.23388076
        %vm571 = vcmask 1046528
        %v572 = vrot.slane %v547, 1
        %v573 = vrot.slane %v548, 1
        %v574 = vsel %vm571, %v572, %v573
        %v575 = vrot.slane %v549, 1
        %v576 = vsel %vm571, %v573, %v575
        %v577 = vrot.slane %v550, 1
        %v578 = vrot.slane %v551, 1
        %v579 = vsel %vm571, %v577, %v578
        %v580 = vrot.slane %v552, 1
        %v581 = vsel %vm571, %v578, %v580
        %v582 = vrot.slane %v553, 1
        %v583 = vrot.slane %v554, 1
        %v584 = vsel %vm571, %v582, %v583
        %v585 = vrot.slane %v555, 1
        %v586 = vsel %vm571, %v583, %v585
        %v587 = vrot.slane %v556, 1
        %v588 = vrot.slane %v557, 1
        %v589 = vsel %vm571, %v587, %v588
        %v590 = vrot.slane %v558, 1
        %v591 = vsel %vm571, %v588, %v590
        %v600 = vadd.f32 %v539, %v574
        %v601 = vadd.f32 %v540, %v576
        %v602 = vadd.f32 %v541, %v579
        %v603 = vadd.f32 %v542, %v581
        %v604 = vadd.f32 %v543, %v584
        %v605 = vadd.f32 %v544, %v586
        %v606 = vadd.f32 %v545, %v589
        %v607 = vadd.f32 %v546, %v591
        %v608 = vmul.f32 %v526, 0.2920817
        %v609 = vmul.f32 %v483, 0.2920817
        %v610 = vmul.f32 %v535, 0.2920817
        %v611 = vmul.f32 %v527, 0.2920817
        %v612 = vmul.f32 %v486, 0.2920817
        %v613 = vmul.f32 %v536, 0.2920817
        %v614 = vmul.f32 %v528, 0.2920817
        %v615 = vmul.f32 %v489, 0.2920817
        %v616 = vmul.f32 %v537, 0.2920817
        %v617 = vmul.f32 %v529, 0.2920817
        %v618 = vmul.f32 %v492, 0.2920817
        %v619 = vmul.f32 %v538, 0.2920817
        %vm632 = vcmask 1045504
        %v633 = vrot.slane %v608, 2
        %v634 = vrot.slane %v609, 2
        %v635 = vsel %vm632, %v633, %v634
        %v636 = vrot.slane %v610, 2
        %v637 = vsel %vm632, %v634, %v636
        %v638 = vrot.slane %v611, 2
        %v639 = vrot.slane %v612, 2
        %v640 = vsel %vm632, %v638, %v639
        %v641 = vrot.slane %v613, 2
        %v642 = vsel %vm632, %v639, %v641
        %v643 = vrot.slane %v614, 2
        %v644 = vrot.slane %v615, 2
        %v645 = vsel %vm632, %v643, %v644
        %v646 = vrot.slane %v616, 2
        %v647 = vsel %vm632, %v644, %v646
        %v648 = vrot.slane %v617, 2
        %v649 = vrot.slane %v618, 2
        %v650 = vsel %vm632, %v648, %v649
        %v651 = vrot.slane %v619, 2
        %v652 = vsel %vm632, %v649, %v651
        %v661 = vadd.f32 %v600, %v635
        %v662 = vadd.f32 %v601, %v637
        %v663 = vadd.f32 %v602, %v640
        %v664 = vadd.f32 %v603, %v642
        %v665 = vadd.f32 %v604, %v645
        %v666 = vadd.f32 %v605, %v647
        %v667 = vadd.f32 %v606, %v650
        %v668 = vadd.f32 %v607, %v652
        %vm669 = vcmask 1044480
        %v670 = vrot.slane %v547, 3
        %v671 = vrot.slane %v548, 3
        %v672 = vsel %vm669, %v670, %v671
        %v673 = vrot.slane %v549, 3
        %v674 = vsel %vm669, %v671, %v673
        %v675 = vrot.slane %v550, 3
        %v676 = vrot.slane %v551, 3
        %v677 = vsel %vm669, %v675, %v676
        %v678 = vrot.slane %v552, 3
        %v679 = vsel %vm669, %v676, %v678
        %v680 = vrot.slane %v553, 3
        %v681 = vrot.slane %v554, 3
        %v682 = vsel %vm669, %v680, %v681
        %v683 = vrot.slane %v555, 3
        %v684 = vsel %vm669, %v681, %v683
        %v685 = vrot.slane %v556, 3
        %v686 = vrot.slane %v557, 3
        %v687 = vsel %vm669, %v685, %v686
        %v688 = vrot.slane %v558, 3
        %v689 = vsel %vm669, %v686, %v688
        %v698 = vadd.f32 %v661, %v672
        %v699 = vadd.f32 %v662, %v674
        %v700 = vadd.f32 %v663, %v677
        %v701 = vadd.f32 %v664, %v679
        %v702 = vadd.f32 %v665, %v682
        %v703 = vadd.f32 %v666, %v684
        %v704 = vadd.f32 %v667, %v687
        %v705 = vadd.f32 %v668, %v689
        %v706 = vmul.f32 %v535, 0.120078385
        %v707 = vmul.f32 %v536, 0.120078385
        %v708 = vmul.f32 %v537, 0.120078385
        %v709 = vmul.f32 %v538, 0.120078385
        %vm722 = vcmask 1043456
        %v723 = vrot.slane %v539, 4
        %v724 = vrot.slane %v540, 4
        %v725 = vsel %vm722, %v723, %v724
        %v726 = vrot.slane %v706, 4
        %v727 = vsel %vm722, %v724, %v726
        %v728 = vrot.slane %v541, 4
        %v729 = vrot.slane %v542, 4
        %v730 = vsel %vm722, %v728, %v729
        %v731 = vrot.slane %v707, 4
        %v732 = vsel %vm722, %v729, %v731
        %v733 = vrot.slane %v543, 4
        %v734 = vrot.slane %v544, 4
        %v735 = vsel %vm722, %v733, %v734
        %v736 = vrot.slane %v708, 4
        %v737 = vsel %vm722, %v734, %v736
        %v738 = vrot.slane %v545, 4
        %v739 = vrot.slane %v546, 4
        %v740 = vsel %vm722, %v738, %v739
        %v741 = vrot.slane %v709, 4
        %v742 = vsel %vm722, %v739, %v741
        %v751 = vadd.f32 %v698, %v725
        %v752 = vadd.f32 %v699, %v727
        %v753 = vadd.f32 %v700, %v730
        %v754 = vadd.f32 %v701, %v732
        %v755 = vadd.f32 %v702, %v735
        %v756 = vadd.f32 %v703, %v737
        %v757 = vadd.f32 %v704, %v740
        %v758 = vadd.f32 %v705, %v742
        %v759 = vmul.f32 %v140, 2.0
        %v760 = vmul.f32 %v141, 2.0
        %v761 = vmul.f32 %v142, 2.0
        %v762 = vmul.f32 %v143, 2.0
        %v763 = vmul.f32 %v144, 2.0
        %v764 = vmul.f32 %v145, 2.0
        %v765 = vmul.f32 %v146, 2.0
        %v766 = vmul.f32 %v147, 2.0
        %v767 = vsub.f32 %v759, %v751
        %v768 = vsub.f32 %v760, %v752
        %v769 = vsub.f32 %v761, %v753
        %v770 = vsub.f32 %v762, %v754
        %v771 = vsub.f32 %v763, %v755
        %v772 = vsub.f32 %v764, %v756
        %v773 = vsub.f32 %v765, %v757
        %v774 = vsub.f32 %v766, %v758
        %vm775 = vcmask 130048
        %776 = vst.msk [vmem:[%s137] sm:$0xff] %vm775, %v767
        %777 = vst.msk [vmem:[%s137 + $0x8] sm:$0xff] %vm775, %v768
        %778 = vst.msk [vmem:[%s137 + $0x10] sm:$0xff] %vm775, %v769
        %779 = vst.msk [vmem:[%s137 + $0x18] sm:$0xff] %vm775, %v770
        %780 = vst.msk [vmem:[%s137 + $0x20] sm:$0xff] %vm775, %v771
        %781 = vst.msk [vmem:[%s137 + $0x28] sm:$0xff] %vm775, %v772
        %782 = vst.msk [vmem:[%s137 + $0x30] sm:$0xff] %vm775, %v773
        %783 = vst.msk [vmem:[%s137 + $0x38] sm:$0xff] %vm775, %v774
        %s784 = sand.u32 %s52, 1
        %s785 = scalar_lea.sflag [#allocation4], %s784
        %s786 = sand.u32 %s52, 1
        %s787 = smul.addr %s786, 64
        %s788 = scalar_lea.vmem [#allocation5], %s787
        // Predicated region
        $region29: #{tpu_custom_call.1} parent=23 // pred_check
          %p789 = pneg %p62
        $region30: #{tpu_custom_call.1} parent=23 // pred_check_branch
          %791 = sbr.rel (%p789) target = $region32
        $region31: #{tpu_custom_call.1} parent=23 // pred_region
          %s792 = smul.u32 4, %s18
          %794 = vsyncadd %s785, 0
          %s795 = smul.addr %s792, 2
          %s796 = smul.addr %s795, 8
          %s797 = scalar_lea.hbm %s1, %s796
          %s798 = sshll.u32 %s788, 4
          %s799 = int_to_ptr.vmem [resolvable:$true] %s798
          %s800 = sshll.u32 %s797, 4
          %s801 = int_to_ptr.hbm [resolvable:$true] %s800
          %806 = dma.vmem_to_hbm [thread:$0]  %s799, 1024, %s801, %s785, 128, 128, 8
        $region32: #{tpu_custom_call.1} parent=23 // pred_fallthru
          _
      $region24: #{tpu_custom_call.1} parent=5 // pred_fallthru
        _
      %p807 = scmp.le.s32.totalorder 2, %s13
      // Predicated region
      $region33: #{tpu_custom_call.1} parent=5 // pred_check
        %p808 = pneg %p807
      $region34: #{tpu_custom_call.1} parent=5 // pred_check_branch
        %810 = sbr.rel (%p808) target = $region36
      $region35: #{tpu_custom_call.1} parent=5 // pred_region
        %s811 = ssub.s32 %s13, 2
        // Predicated region
        $region37: #{tpu_custom_call.1} parent=35 // pred_check
          %p812 = pneg %p68
        $region38: #{tpu_custom_call.1} parent=35 // pred_check_branch
          %814 = sbr.rel (%p812) target = $region40
        $region39: #{tpu_custom_call.1} parent=35 // pred_region
          %s815 = sand.u32 %s53, 1
          %s816 = scalar_lea.sflag [#allocation4], %s815
          %s817 = sand.u32 %s53, 1
          %s818 = smul.addr %s817, 64
          %s819 = scalar_lea.vmem [#allocation5], %s818
          %821 = dma.done %s816, 1024
        $region40: #{tpu_custom_call.1} parent=35 // pred_fallthru
          _
      $region36: #{tpu_custom_call.1} parent=5 // pred_fallthru
        _
    $region6: #{tpu_custom_call.1} parent=1 // loop_footer
      %s17 = sadd.s32 1, %s13
    $region7: #{tpu_custom_call.1} parent=1 // loop_footer_branch
      %12 = sbr.rel target = $region3
    $region8: #{tpu_custom_call.1} parent=1 // loop_exit
      _
    %822 = vsyncpa [#allocation3], 1
    %s823 = scalar_lea.sflag [#allocation3], 1
    %824 = vsyncpa %s823, 1
    %825 = vsyncpa [#allocation4], 1
    %s826 = scalar_lea.sflag [#allocation4], 1
    %827 = vsyncpa %s826, 1

</llo_original>
